<compile_context>
chip_gen: v5e
topology: v5e:2x2
jax: 0.10.0
libtpu: 0.0.40
codegen_flags: <defaults>
</compile_context>

<pallas_src>
import jax
import jax.numpy as jnp
from jax.experimental import pallas as pl
from jax.experimental.pallas import tpu as pltpu

_F32 = 4


def _stream_ann_kernel(
    x_ref,               # (TB, D)    float32
    w1_ref, b1_ref,      # (128, D)   cdt, (128, 1) f32
    w2_ref, b2_ref,      # (64, 128), (64, 1)
    w3_ref, b3_ref,      # (32, 64),  (32, 1)
    w4_ref, b4_ref,      # (16, 32),  (16, 1)
    w5_ref, b5_ref,      # (O, 16),   (O, 1)
    o_ref,               # (O, TB)    float32
):
    cdt = w1_ref.dtype   # MXU operand dtype (bf16 by default, f32 if requested)

    # Put the batch tile on the lane axis (XLU transpose; D is tiny) and cast
    # to the MXU operand dtype in-kernel (hidden under the matmul work).
    xt = x_ref[...].T.astype(cdt)                        # (D, TB)

    # fc1 + relu; dropout1 = identity (eval)
    h = jnp.dot(w1_ref[...], xt, preferred_element_type=jnp.float32)
    h = jnp.maximum(h + b1_ref[...], 0.0)                # (128, TB) f32

    # fc2 + relu; dropout2 = identity (eval)
    h = jnp.dot(w2_ref[...], h.astype(cdt), preferred_element_type=jnp.float32)
    h = jnp.maximum(h + b2_ref[...], 0.0)                # (64, TB)

    # fc3 + relu; dropout3 = identity (eval)
    h = jnp.dot(w3_ref[...], h.astype(cdt), preferred_element_type=jnp.float32)
    h = jnp.maximum(h + b3_ref[...], 0.0)                # (32, TB)

    # fc4 + relu; dropout4 = identity (eval)
    h = jnp.dot(w4_ref[...], h.astype(cdt), preferred_element_type=jnp.float32)
    h = jnp.maximum(h + b4_ref[...], 0.0)                # (16, TB)

    # output layer (no activation) -> lane-dense (O, TB) store
    y = jnp.dot(w5_ref[...], h.astype(cdt), preferred_element_type=jnp.float32)
    o_ref[...] = (y + b5_ref[...]).astype(o_ref.dtype)


def _round_up(n, m):
    return ((n + m - 1) // m) * m


def _num_tensorcores():
    """Best-effort count of TensorCores one grid is sharded over via
    dimension_semantics=("parallel",): 1 on v5e/v6e, 2 on v7x/megacore."""
    try:
        dev = jax.devices()[0]
    except Exception:
        return 1
    for attr in ("num_cores", "core_count"):
        val = getattr(dev, attr, None)
        if isinstance(val, int) and val >= 1:
            return val
    kind = str(getattr(dev, "device_kind", "")).lower()
    if "v7" in kind:
        return 2
    return 1


def _choose_block_b(B, requested, num_cores):
    """Batch tile for the lane axis of the transposed formulation.

    * One full-batch tile when it fits the request (block dim == array dim is
      always a legal BlockSpec) -> no pointless split on single-TC chips.
    * Otherwise a multiple of 128 (batch sits on the 128-lane axis).
    * On multi-TensorCore parts, keep the grid-step count a multiple of the
      core count so every core gets equal work.
    """
    requested = max(int(requested), 8)
    if num_cores >= 2 and B >= 2 * 128:
        requested = min(requested, _round_up(pl.cdiv(B, num_cores), 128))
    if requested >= B:
        return B
    bb = max(128, (requested // 128) * 128)
    if num_cores >= 2:
        steps = pl.cdiv(B, bb)
        if steps % num_cores:
            steps = _round_up(steps, num_cores)
            bb = max(128, _round_up(pl.cdiv(B, steps), 128))
    return min(bb, B)


def _vmem_bytes_estimate(bb, D, O, prepared):
    """Rough (conservative) VMEM footprint for one pipelined grid step."""
    x_tile = 2 * _round_up(bb, 8) * _round_up(D, 128) * _F32        # dbl-buffered
    out_tile = 2 * _round_up(O, 8) * _round_up(bb, 128) * _F32
    w_bytes = 0
    for a in prepared:
        r, c = a.shape
        w_bytes += 2 * _round_up(r, 8) * _round_up(c, 128) * a.dtype.itemsize
    # in-kernel intermediates: x^T plus activation slabs (f32 + cast copies)
    inter = (_round_up(D, 8) + 2 * (128 + 64 + 32 + 16 + _round_up(O, 8)))
    inter *= _round_up(bb, 128) * _F32
    return x_tile + out_tile + w_bytes + inter


def prepare_params(params, compute_dtype=jnp.bfloat16):
    """Hoist per-call casts/reshapes: weights (out, in) cast once to the MXU
    operand dtype; biases as (out, 1) float32 columns (broadcast over the
    lane/batch axis in-kernel).  Call once at model-load time."""
    flat = []
    for k in range(1, 6):
        flat.append(jnp.asarray(params[f"w{k}"], dtype=compute_dtype))
        flat.append(jnp.asarray(params[f"b{k}"], dtype=jnp.float32).reshape(-1, 1))
    return tuple(flat)


def stream_ann_forward(x, params, *, block_b=1024, compute_dtype=jnp.bfloat16,
                       num_tensorcores=None, x_buffers=2):
    """x: (B, input_dim) float32.
    params: dict of (out, in) weights + (out,) biases, or an already-prepared
    tuple from prepare_params().  Returns (B, output_dim) float32."""
    if isinstance(params, dict):
        params = prepare_params(params, compute_dtype)

    B, D = x.shape
    O = params[-1].shape[0]                      # b5 is (O, 1)

    n_cores = _num_tensorcores() if num_tensorcores is None else int(num_tensorcores)
    bb = _choose_block_b(B, block_b, n_cores)

    # VMEM budget: shrink the batch tile until it fits a budget that is safe on
    # every generation (v7x: 64 MiB physical), and raise the scoped limit when
    # the footprint exceeds the smallest default (v5e: 16 MiB).
    budget = 40 * 1024 * 1024
    est = _vmem_bytes_estimate(bb, D, O, params)
    while est > budget and bb > 128:
        bb = max(128, ((bb // 2) // 128) * 128)
        est = _vmem_bytes_estimate(bb, D, O, params)
    vmem_limit = None
    if est > 16 * 1024 * 1024:
        vmem_limit = min(max(int(est * 1.4), est + (4 << 20)), 60 * 1024 * 1024)

    grid = (pl.cdiv(B, bb),)   # no host pad: Pallas masks the partial last block

    def _resident_spec(shape):
        # Whole-array block with a constant index_map -> resident in VMEM.
        return pl.BlockSpec(shape, lambda i: (0,) * len(shape))

    x_spec_kwargs = {}
    if x_buffers != 2:
        # Optional deeper pipelining for the x stream (sweep if DMA is exposed).
        x_spec_kwargs["pipeline_mode"] = pl.Buffered(int(x_buffers))
    x_spec = pl.BlockSpec((bb, D), lambda i: (i, 0), **x_spec_kwargs)

    in_specs = [x_spec] + [_resident_spec(a.shape) for a in params]

    out_t = pl.pallas_call(
        _stream_ann_kernel,
        out_shape=jax.ShapeDtypeStruct((O, B), jnp.float32),
        grid_spec=pltpu.PrefetchScalarGridSpec(
            num_scalar_prefetch=0,
            grid=grid,
            in_specs=in_specs,
            out_specs=pl.BlockSpec((O, bb), lambda i: (0, i)),
        ),
        compiler_params=pltpu.CompilerParams(
            dimension_semantics=("parallel",),
            vmem_limit_bytes=vmem_limit,
        ),
    )(x, *params)

    return out_t.T        # (O, B) lane-dense kernel output -> (B, O)


def init_params(input_dim, output_dim=4, seed=0):
    """Deterministic init mimicking nn.Linear (uniform +/- 1/sqrt(fan_in)).
    Weights stored as (out, in) -- PyTorch layout -- f32 master copies."""
    dims = [input_dim, 128, 64, 32, 16, output_dim]
    key = jax.random.PRNGKey(seed)
    params = {}
    for k in range(1, 6):
        fan_in, fan_out = dims[k - 1], dims[k]
        key, kw, kb = jax.random.split(key, 3)
        bound = 1.0 / jnp.sqrt(jnp.float32(fan_in))
        params[f"w{k}"] = jax.random.uniform(
            kw, (fan_out, fan_in), jnp.float32, -bound, bound)
        params[f"b{k}"] = jax.random.uniform(
            kb, (fan_out,), jnp.float32, -bound, bound)
    return params


def _reference_forward(x, params, compute_dtype=jnp.float32):
    """Pure-JAX reference in the same transposed orientation as the kernel;
    compute_dtype matches the kernel's MXU operand dtype exactly."""
    h = x.T.astype(compute_dtype)                         # (D, B)
    for k in range(1, 6):
        w = params[f"w{k}"].astype(compute_dtype)         # (out, in)
        b = params[f"b{k}"].astype(jnp.float32).reshape(-1, 1)
        y = jnp.dot(w, h, preferred_element_type=jnp.float32) + b
        h = jnp.maximum(y, 0.0) if k < 5 else y
        if k < 5:
            h = h.astype(compute_dtype)
    return h.T                                            # (B, O)


if __name__ == "__main__":
    input_dim = 32
    output_dim = 4
    batch = 8

    kx = jax.random.PRNGKey(0)
    x = jax.random.normal(kx, (batch, input_dim), dtype=jnp.float32)
    params = init_params(input_dim, output_dim, seed=0)
    prepared = prepare_params(params, compute_dtype=jnp.bfloat16)  # hoisted once

    y = stream_ann_forward(x, prepared)
    y = jax.block_until_ready(y)
    assert y.shape == (batch, output_dim)

    # Numerics-matched reference (same bf16 operands, f32 accumulation).
    y_ref_matched = _reference_forward(x, params, compute_dtype=jnp.bfloat16)
    assert jnp.allclose(y, y_ref_matched, atol=2e-3, rtol=2e-3), \
        "mismatch vs bf16-matched reference"

    # Sanity vs full-f32 reference (difference is only bf16 quantization).
    y_ref_f32 = _reference_forward(x, params, compute_dtype=jnp.float32)
    assert jnp.allclose(y, y_ref_f32, atol=5e-2, rtol=5e-2), \
        "mismatch vs f32 reference"

    print("KERNEL_OK")
</pallas_src>

<mosaic_0001>
module attributes {stable_mosaic.version = 11 : i64} {
  func.func @_stream_ann_kernel(%arg0: i32, %arg1: memref<8x32xf32, #tpu.memory_space<vmem>>, %arg2: memref<128x32xbf16, #tpu.memory_space<vmem>>, %arg3: memref<128x1xf32, #tpu.memory_space<vmem>>, %arg4: memref<64x128xbf16, #tpu.memory_space<vmem>>, %arg5: memref<64x1xf32, #tpu.memory_space<vmem>>, %arg6: memref<32x64xbf16, #tpu.memory_space<vmem>>, %arg7: memref<32x1xf32, #tpu.memory_space<vmem>>, %arg8: memref<16x32xbf16, #tpu.memory_space<vmem>>, %arg9: memref<16x1xf32, #tpu.memory_space<vmem>>, %arg10: memref<4x16xbf16, #tpu.memory_space<vmem>>, %arg11: memref<4x1xf32, #tpu.memory_space<vmem>>, %arg12: memref<4x8xf32, #tpu.memory_space<vmem>>) attributes {dimension_semantics = [#tpu.dimension_semantics<parallel>], iteration_bounds = array<i64: 1>, scalar_prefetch = 0 : i64, scratch_operands = 0 : i64, tpu.core_type = #tpu.core_type<tc>, window_params = [{transform_indices = @transform_0, window_bounds = array<i64: 8, 32>}, {pipeline_mode = #tpu.pipeline_mode<synchronous>, transform_indices = @transform_1, window_bounds = array<i64: 128, 32>}, {pipeline_mode = #tpu.pipeline_mode<synchronous>, transform_indices = @transform_2, window_bounds = array<i64: 128, 1>}, {pipeline_mode = #tpu.pipeline_mode<synchronous>, transform_indices = @transform_3, window_bounds = array<i64: 64, 128>}, {pipeline_mode = #tpu.pipeline_mode<synchronous>, transform_indices = @transform_4, window_bounds = array<i64: 64, 1>}, {pipeline_mode = #tpu.pipeline_mode<synchronous>, transform_indices = @transform_5, window_bounds = array<i64: 32, 64>}, {pipeline_mode = #tpu.pipeline_mode<synchronous>, transform_indices = @transform_6, window_bounds = array<i64: 32, 1>}, {pipeline_mode = #tpu.pipeline_mode<synchronous>, transform_indices = @transform_7, window_bounds = array<i64: 16, 32>}, {pipeline_mode = #tpu.pipeline_mode<synchronous>, transform_indices = @transform_8, window_bounds = array<i64: 16, 1>}, {pipeline_mode = #tpu.pipeline_mode<synchronous>, transform_indices = @transform_9, window_bounds = array<i64: 4, 16>}, {pipeline_mode = #tpu.pipeline_mode<synchronous>, transform_indices = @transform_10, window_bounds = array<i64: 4, 1>}, {transform_indices = @transform_11, window_bounds = array<i64: 4, 8>}]} {
    %c0 = arith.constant 0 : index
    %c0_0 = arith.constant 0 : index
    %0 = vector.load %arg1[%c0, %c0_0] : memref<8x32xf32, #tpu.memory_space<vmem>>, vector<8x32xf32>
    %1 = tpu.transpose %0, [1, 0] : vector<8x32xf32> -> vector<32x8xf32>
    %2 = arith.truncf %1 : vector<32x8xf32> to vector<32x8xbf16>
    %c0_1 = arith.constant 0 : index
    %c0_2 = arith.constant 0 : index
    %3 = vector.load %arg2[%c0_1, %c0_2] : memref<128x32xbf16, #tpu.memory_space<vmem>>, vector<128x32xbf16>
    %cst = arith.constant dense<0.000000e+00> : vector<128x8xf32>
    %4 = tpu.matmul %3, %2, %cst {dimension_numbers = #tpu.dot_dimension_numbers<[1], [0], [0], [1], [0, 0, 1, 1], [], []>} : vector<128x32xbf16>, vector<32x8xbf16>, vector<128x8xf32> -> vector<128x8xf32>
    %c0_3 = arith.constant 0 : index
    %c0_4 = arith.constant 0 : index
    %5 = vector.load %arg3[%c0_3, %c0_4] : memref<128x1xf32, #tpu.memory_space<vmem>>, vector<128x1xf32>
    %6 = vector.broadcast %5 : vector<128x1xf32> to vector<128x8xf32>
    %7 = arith.addf %4, %6 : vector<128x8xf32>
    %cst_5 = arith.constant 0.000000e+00 : f32
    %8 = vector.broadcast %cst_5 : f32 to vector<128x8xf32>
    %9 = arith.maximumf %7, %8 : vector<128x8xf32>
    %c0_6 = arith.constant 0 : index
    %c0_7 = arith.constant 0 : index
    %10 = vector.load %arg4[%c0_6, %c0_7] : memref<64x128xbf16, #tpu.memory_space<vmem>>, vector<64x128xbf16>
    %11 = arith.truncf %9 : vector<128x8xf32> to vector<128x8xbf16>
    %cst_8 = arith.constant dense<0.000000e+00> : vector<64x8xf32>
    %12 = tpu.matmul %10, %11, %cst_8 {dimension_numbers = #tpu.dot_dimension_numbers<[1], [0], [0], [1], [0, 0, 1, 1], [], []>} : vector<64x128xbf16>, vector<128x8xbf16>, vector<64x8xf32> -> vector<64x8xf32>
    %c0_9 = arith.constant 0 : index
    %c0_10 = arith.constant 0 : index
    %13 = vector.load %arg5[%c0_9, %c0_10] : memref<64x1xf32, #tpu.memory_space<vmem>>, vector<64x1xf32>
    %14 = vector.broadcast %13 : vector<64x1xf32> to vector<64x8xf32>
    %15 = arith.addf %12, %14 : vector<64x8xf32>
    %cst_11 = arith.constant 0.000000e+00 : f32
    %16 = vector.broadcast %cst_11 : f32 to vector<64x8xf32>
    %17 = arith.maximumf %15, %16 : vector<64x8xf32>
    %c0_12 = arith.constant 0 : index
    %c0_13 = arith.constant 0 : index
    %18 = vector.load %arg6[%c0_12, %c0_13] : memref<32x64xbf16, #tpu.memory_space<vmem>>, vector<32x64xbf16>
    %19 = arith.truncf %17 : vector<64x8xf32> to vector<64x8xbf16>
    %cst_14 = arith.constant dense<0.000000e+00> : vector<32x8xf32>
    %20 = tpu.matmul %18, %19, %cst_14 {dimension_numbers = #tpu.dot_dimension_numbers<[1], [0], [0], [1], [0, 0, 1, 1], [], []>} : vector<32x64xbf16>, vector<64x8xbf16>, vector<32x8xf32> -> vector<32x8xf32>
    %c0_15 = arith.constant 0 : index
    %c0_16 = arith.constant 0 : index
    %21 = vector.load %arg7[%c0_15, %c0_16] : memref<32x1xf32, #tpu.memory_space<vmem>>, vector<32x1xf32>
    %22 = vector.broadcast %21 : vector<32x1xf32> to vector<32x8xf32>
    %23 = arith.addf %20, %22 : vector<32x8xf32>
    %cst_17 = arith.constant 0.000000e+00 : f32
    %24 = vector.broadcast %cst_17 : f32 to vector<32x8xf32>
    %25 = arith.maximumf %23, %24 : vector<32x8xf32>
    %c0_18 = arith.constant 0 : index
    %c0_19 = arith.constant 0 : index
    %26 = vector.load %arg8[%c0_18, %c0_19] : memref<16x32xbf16, #tpu.memory_space<vmem>>, vector<16x32xbf16>
    %27 = arith.truncf %25 : vector<32x8xf32> to vector<32x8xbf16>
    %cst_20 = arith.constant dense<0.000000e+00> : vector<16x8xf32>
    %28 = tpu.matmul %26, %27, %cst_20 {dimension_numbers = #tpu.dot_dimension_numbers<[1], [0], [0], [1], [0, 0, 1, 1], [], []>} : vector<16x32xbf16>, vector<32x8xbf16>, vector<16x8xf32> -> vector<16x8xf32>
    %c0_21 = arith.constant 0 : index
    %c0_22 = arith.constant 0 : index
    %29 = vector.load %arg9[%c0_21, %c0_22] : memref<16x1xf32, #tpu.memory_space<vmem>>, vector<16x1xf32>
    %30 = vector.broadcast %29 : vector<16x1xf32> to vector<16x8xf32>
    %31 = arith.addf %28, %30 : vector<16x8xf32>
    %cst_23 = arith.constant 0.000000e+00 : f32
    %32 = vector.broadcast %cst_23 : f32 to vector<16x8xf32>
    %33 = arith.maximumf %31, %32 : vector<16x8xf32>
    %c0_24 = arith.constant 0 : index
    %c0_25 = arith.constant 0 : index
    %34 = vector.load %arg10[%c0_24, %c0_25] : memref<4x16xbf16, #tpu.memory_space<vmem>>, vector<4x16xbf16>
    %35 = arith.truncf %33 : vector<16x8xf32> to vector<16x8xbf16>
    %cst_26 = arith.constant dense<0.000000e+00> : vector<4x8xf32>
    %36 = tpu.matmul %34, %35, %cst_26 {dimension_numbers = #tpu.dot_dimension_numbers<[1], [0], [0], [1], [0, 0, 1, 1], [], []>} : vector<4x16xbf16>, vector<16x8xbf16>, vector<4x8xf32> -> vector<4x8xf32>
    %c0_27 = arith.constant 0 : index
    %c0_28 = arith.constant 0 : index
    %37 = vector.load %arg11[%c0_27, %c0_28] : memref<4x1xf32, #tpu.memory_space<vmem>>, vector<4x1xf32>
    %38 = vector.broadcast %37 : vector<4x1xf32> to vector<4x8xf32>
    %39 = arith.addf %36, %38 : vector<4x8xf32>
    %c0_29 = arith.constant 0 : index
    %c0_30 = arith.constant 0 : index
    %40 = vector.load %arg12[%c0_29, %c0_30] : memref<4x8xf32, #tpu.memory_space<vmem>>, vector<4x8xf32>
    tpu.vector_store %arg12[%c0_29, %c0_30], %39 {strides = array<i32>} : memref<4x8xf32, #tpu.memory_space<vmem>>, vector<4x8xf32>,
    return
  }
  func.func @transform_0(%arg0: i32) -> (i32, i32) {
    %c0_i32 = arith.constant 0 : i32
    %c0_i32_0 = arith.constant 0 : i32
    return %arg0, %c0_i32 : i32, i32
  }
  func.func @transform_1(%arg0: i32) -> (i32, i32) {
    %c0_i32 = arith.constant 0 : i32
    %c0_i32_0 = arith.constant 0 : i32
    %c0_i32_1 = arith.constant 0 : i32
    return %c0_i32, %c0_i32_0 : i32, i32
  }
  func.func @transform_2(%arg0: i32) -> (i32, i32) {
    %c0_i32 = arith.constant 0 : i32
    %c0_i32_0 = arith.constant 0 : i32
    %c0_i32_1 = arith.constant 0 : i32
    return %c0_i32, %c0_i32_0 : i32, i32
  }
  func.func @transform_3(%arg0: i32) -> (i32, i32) {
    %c0_i32 = arith.constant 0 : i32
    %c0_i32_0 = arith.constant 0 : i32
    %c0_i32_1 = arith.constant 0 : i32
    return %c0_i32, %c0_i32_0 : i32, i32
  }
  func.func @transform_4(%arg0: i32) -> (i32, i32) {
    %c0_i32 = arith.constant 0 : i32
    %c0_i32_0 = arith.constant 0 : i32
    %c0_i32_1 = arith.constant 0 : i32
    return %c0_i32, %c0_i32_0 : i32, i32
  }
  func.func @transform_5(%arg0: i32) -> (i32, i32) {
    %c0_i32 = arith.constant 0 : i32
    %c0_i32_0 = arith.constant 0 : i32
    %c0_i32_1 = arith.constant 0 : i32
    return %c0_i32, %c0_i32_0 : i32, i32
  }
  func.func @transform_6(%arg0: i32) -> (i32, i32) {
    %c0_i32 = arith.constant 0 : i32
    %c0_i32_0 = arith.constant 0 : i32
    %c0_i32_1 = arith.constant 0 : i32
    return %c0_i32, %c0_i32_0 : i32, i32
  }
  func.func @transform_7(%arg0: i32) -> (i32, i32) {
    %c0_i32 = arith.constant 0 : i32
    %c0_i32_0 = arith.constant 0 : i32
    %c0_i32_1 = arith.constant 0 : i32
    return %c0_i32, %c0_i32_0 : i32, i32
  }
  func.func @transform_8(%arg0: i32) -> (i32, i32) {
    %c0_i32 = arith.constant 0 : i32
    %c0_i32_0 = arith.constant 0 : i32
    %c0_i32_1 = arith.constant 0 : i32
    return %c0_i32, %c0_i32_0 : i32, i32
  }
  func.func @transform_9(%arg0: i32) -> (i32, i32) {
    %c0_i32 = arith.constant 0 : i32
    %c0_i32_0 = arith.constant 0 : i32
    %c0_i32_1 = arith.constant 0 : i32
    return %c0_i32, %c0_i32_0 : i32, i32
  }
  func.func @transform_10(%arg0: i32) -> (i32, i32) {
    %c0_i32 = arith.constant 0 : i32
    %c0_i32_0 = arith.constant 0 : i32
    %c0_i32_1 = arith.constant 0 : i32
    return %c0_i32, %c0_i32_0 : i32, i32
  }
  func.func @transform_11(%arg0: i32) -> (i32, i32) {
    %c0_i32 = arith.constant 0 : i32
    %c0_i32_0 = arith.constant 0 : i32
    return %c0_i32, %arg0 : i32, i32
  }
}

</mosaic_0001>

<llo_original>
// kernel: tpu_custom_call.1
$region0: #{tpu_custom_call.1}
  #allocation0 [shape = 'u32[]', space=smem, size = 0x4, offset = 0x4, fixed_abs, tag = 'smem constant byte address 0x4 - core index']
  #allocation1 [shape = 'u32[72,128]{1,0:T(1,128)}', space=vmem, size = 0x9000, scoped, tag = 'internal scratch']
  %s0 = inlined_call_operand.vmem [shape: f32[8,32], index: 0, kind: input, shape index: {}]
  %s1 = inlined_call_operand.vmem [shape: bf16[128,32], index: 1, kind: input, shape index: {}]
  %s2 = inlined_call_operand.vmem [shape: f32[128,1], index: 2, kind: input, shape index: {}]
  %s3 = inlined_call_operand.vmem [shape: bf16[64,128], index: 3, kind: input, shape index: {}]
  %s4 = inlined_call_operand.vmem [shape: f32[64,1], index: 4, kind: input, shape index: {}]
  %s5 = inlined_call_operand.vmem [shape: bf16[32,64], index: 5, kind: input, shape index: {}]
  %s6 = inlined_call_operand.vmem [shape: f32[32,1], index: 6, kind: input, shape index: {}]
  %s7 = inlined_call_operand.vmem [shape: bf16[16,32], index: 7, kind: input, shape index: {}]
  %s8 = inlined_call_operand.vmem [shape: f32[16,1], index: 8, kind: input, shape index: {}]
  %s9 = inlined_call_operand.vmem [shape: bf16[4,16], index: 9, kind: input, shape index: {}]
  %s10 = inlined_call_operand.vmem [shape: f32[4,1], index: 10, kind: input, shape index: {}]
  %s11 = inlined_call_operand.hbm [shape: f32[4,8], index: 11, kind: output, shape index: {}]
  %s12 = sld [smem:[#allocation0]]
  $region54: #{tpu_custom_call.1} parent=0
    _
  %s14 = ssub.s32 1, %s12
  %s15 = scalar_select 0, %s14, %s12
  $region1: #{tpu_custom_call.1} parent=0
    #allocation2 [shape = 'u8[2048]{0}', space=vmem, size = 0x800, scoped, tag = 'output window, operand 0, single buffered']
    #allocation3 [shape = 's32[1]{0}', space=sflag, size = 0x4, scoped, tag = 'scoped memory for tpu_custom_call.1']
    %16 = vsyncpa [#allocation3], 0
    // Predicated region
    $region2: #{tpu_custom_call.1} parent=1 // pred_check
      _
    $region3: #{tpu_custom_call.1} parent=1 // pred_check_branch
      %18 = sbr.rel (0) target = $region5
    $region4: #{tpu_custom_call.1} parent=1 // pred_region
      _
    $region5: #{tpu_custom_call.1} parent=1 // pred_fallthru
      _
    // Predicated region
    $region6: #{tpu_custom_call.1} parent=1 // pred_check
      _
    $region7: #{tpu_custom_call.1} parent=1 // pred_check_branch
      %20 = sbr.rel (0) target = $region9
    $region8: #{tpu_custom_call.1} parent=1 // pred_region
      _
    $region9: #{tpu_custom_call.1} parent=1 // pred_fallthru
      _
    // Predicated region
    $region10: #{tpu_custom_call.1} parent=1 // pred_check
      _
    $region11: #{tpu_custom_call.1} parent=1 // pred_check_branch
      %22 = sbr.rel (0) target = $region13
    $region12: #{tpu_custom_call.1} parent=1 // pred_region
      _
    $region13: #{tpu_custom_call.1} parent=1 // pred_fallthru
      _
    // Predicated region
    $region14: #{tpu_custom_call.1} parent=1 // pred_check
      _
    $region15: #{tpu_custom_call.1} parent=1 // pred_check_branch
      %24 = sbr.rel (0) target = $region17
    $region16: #{tpu_custom_call.1} parent=1 // pred_region
      _
    $region17: #{tpu_custom_call.1} parent=1 // pred_fallthru
      _
    // Predicated region
    $region18: #{tpu_custom_call.1} parent=1 // pred_check
      _
    $region19: #{tpu_custom_call.1} parent=1 // pred_check_branch
      %26 = sbr.rel (0) target = $region21
    $region20: #{tpu_custom_call.1} parent=1 // pred_region
      _
    $region21: #{tpu_custom_call.1} parent=1 // pred_fallthru
      _
    // Predicated region
    $region22: #{tpu_custom_call.1} parent=1 // pred_check
      _
    $region23: #{tpu_custom_call.1} parent=1 // pred_check_branch
      %28 = sbr.rel (0) target = $region25
    $region24: #{tpu_custom_call.1} parent=1 // pred_region
      _
    $region25: #{tpu_custom_call.1} parent=1 // pred_fallthru
      _
    // Predicated region
    $region26: #{tpu_custom_call.1} parent=1 // pred_check
      _
    $region27: #{tpu_custom_call.1} parent=1 // pred_check_branch
      %30 = sbr.rel (0) target = $region29
    $region28: #{tpu_custom_call.1} parent=1 // pred_region
      _
    $region29: #{tpu_custom_call.1} parent=1 // pred_fallthru
      _
    // Predicated region
    $region30: #{tpu_custom_call.1} parent=1 // pred_check
      _
    $region31: #{tpu_custom_call.1} parent=1 // pred_check_branch
      %32 = sbr.rel (0) target = $region33
    $region32: #{tpu_custom_call.1} parent=1 // pred_region
      _
    $region33: #{tpu_custom_call.1} parent=1 // pred_fallthru
      _
    // Predicated region
    $region34: #{tpu_custom_call.1} parent=1 // pred_check
      _
    $region35: #{tpu_custom_call.1} parent=1 // pred_check_branch
      %34 = sbr.rel (0) target = $region37
    $region36: #{tpu_custom_call.1} parent=1 // pred_region
      _
    $region37: #{tpu_custom_call.1} parent=1 // pred_fallthru
      _
    // Predicated region
    $region38: #{tpu_custom_call.1} parent=1 // pred_check
      _
    $region39: #{tpu_custom_call.1} parent=1 // pred_check_branch
      %36 = sbr.rel (0) target = $region41
    $region40: #{tpu_custom_call.1} parent=1 // pred_region
      _
    $region41: #{tpu_custom_call.1} parent=1 // pred_fallthru
      _
    // Predicated region
    $region42: #{tpu_custom_call.1} parent=1 // pred_check
      _
    $region43: #{tpu_custom_call.1} parent=1 // pred_check_branch
      %38 = sbr.rel (0) target = $region45
    $region44: #{tpu_custom_call.1} parent=1 // pred_region
      _
    $region45: #{tpu_custom_call.1} parent=1 // pred_fallthru
      _
    %v40 = vld [vmem:[%s0] sm:$0xff]
    %41 = vxpose.xlu0.b32.start [1/16] %v40, 128
    %42 = vxpose.xlu0.b32.cont [2/16] 0.0, 128
    %43 = vxpose.xlu0.b32.cont [3/16] 0.0, 128
    %44 = vxpose.xlu0.b32.cont [4/16] 0.0, 128
    %45 = vxpose.xlu0.b32.cont [5/16] 0.0, 128
    %46 = vxpose.xlu0.b32.cont [6/16] 0.0, 128
    %47 = vxpose.xlu0.b32.cont [7/16] 0.0, 128
    %48 = vxpose.xlu0.b32.cont [8/16] 0.0, 128
    %49 = vxpose.xlu0.b32.cont [9/16] 0.0, 128
    %50 = vxpose.xlu0.b32.cont [10/16] 0.0, 128
    %51 = vxpose.xlu0.b32.cont [11/16] 0.0, 128
    %52 = vxpose.xlu0.b32.cont [12/16] 0.0, 128
    %53 = vxpose.xlu0.b32.cont [13/16] 0.0, 128
    %54 = vxpose.xlu0.b32.cont [14/16] 0.0, 128
    %55 = vxpose.xlu0.b32.cont [15/16] 0.0, 128
    %56 = vxpose.xlu0.b32.end [16/16] 0.0, 128
    %v57 = vpop.trf.xlu0
    %v58 = vpop.trf.xlu0
    %v59 = vpop.trf.xlu0
    %v60 = vpop.trf.xlu0
    %v61 = vpop.trf.xlu0
    %v62 = vpop.trf.xlu0
    %v63 = vpop.trf.xlu0
    %v64 = vpop.trf.xlu0
    %v65 = vpop.trf.xlu0
    %v66 = vpop.trf.xlu0
    %v67 = vpop.trf.xlu0
    %v68 = vpop.trf.xlu0
    %v69 = vpop.trf.xlu0
    %v70 = vpop.trf.xlu0
    %v71 = vpop.trf.xlu0
    %v72 = vpop.trf.xlu0
    %v73 = vpack.c.bf16 %v58, %v57
    %v74 = vpack.c.bf16 %v60, %v59
    %v75 = vld [vmem:[%s1] sm:$0xf]
    %v76 = vld [vmem:[%s1 + $0x4] sm:$0xf]
    %v77 = vld [vmem:[%s1 + $0x8] sm:$0xf]
    %v78 = vld [vmem:[%s1 + $0xc] sm:$0xf]
    %v79 = vld [vmem:[%s1 + $0x10] sm:$0xf]
    %v80 = vld [vmem:[%s1 + $0x14] sm:$0xf]
    %v81 = vld [vmem:[%s1 + $0x18] sm:$0xf]
    %v82 = vld [vmem:[%s1 + $0x1c] sm:$0xf]
    %v83 = vld [vmem:[%s1 + $0x20] sm:$0xf]
    %v84 = vld [vmem:[%s1 + $0x24] sm:$0xf]
    %v85 = vld [vmem:[%s1 + $0x28] sm:$0xf]
    %v86 = vld [vmem:[%s1 + $0x2c] sm:$0xf]
    %v87 = vld [vmem:[%s1 + $0x30] sm:$0xf]
    %v88 = vld [vmem:[%s1 + $0x34] sm:$0xf]
    %v89 = vld [vmem:[%s1 + $0x38] sm:$0xf]
    %v90 = vld [vmem:[%s1 + $0x3c] sm:$0xf]
    %v91 = vld [vmem:[%s2] sm:$0xff]
    %v92 = vld [vmem:[%s2 + $0x8] sm:$0xff]
    %v93 = vld [vmem:[%s2 + $0x10] sm:$0xff]
    %v94 = vld [vmem:[%s2 + $0x18] sm:$0xff]
    %v95 = vld [vmem:[%s2 + $0x20] sm:$0xff]
    %v96 = vld [vmem:[%s2 + $0x28] sm:$0xff]
    %v97 = vld [vmem:[%s2 + $0x30] sm:$0xff]
    %v98 = vld [vmem:[%s2 + $0x38] sm:$0xff]
    %v99 = vld [vmem:[%s2 + $0x40] sm:$0xff]
    %v100 = vld [vmem:[%s2 + $0x48] sm:$0xff]
    %v101 = vld [vmem:[%s2 + $0x50] sm:$0xff]
    %v102 = vld [vmem:[%s2 + $0x58] sm:$0xff]
    %v103 = vld [vmem:[%s2 + $0x60] sm:$0xff]
    %v104 = vld [vmem:[%s2 + $0x68] sm:$0xff]
    %v105 = vld [vmem:[%s2 + $0x70] sm:$0xff]
    %v106 = vld [vmem:[%s2 + $0x78] sm:$0xff]
    %108 = vset.pattern.permute.xlu0 0
    %109 = vperm.xlu0 %108, %v91
    %v110 = vpop.permute.xlu0 %109
    %113 = vset.pattern.permute.xlu0 0
    %114 = vperm.xlu0 %113, %v92
    %v115 = vpop.permute.xlu0 %114
    %118 = vset.pattern.permute.xlu0 0
    %119 = vperm.xlu0 %118, %v93
    %v120 = vpop.permute.xlu0 %119
    %123 = vset.pattern.permute.xlu0 0
    %124 = vperm.xlu0 %123, %v94
    %v125 = vpop.permute.xlu0 %124
    %128 = vset.pattern.permute.xlu0 0
    %129 = vperm.xlu0 %128, %v95
    %v130 = vpop.permute.xlu0 %129
    %133 = vset.pattern.permute.xlu0 0
    %134 = vperm.xlu0 %133, %v96
    %v135 = vpop.permute.xlu0 %134
    %138 = vset.pattern.permute.xlu0 0
    %139 = vperm.xlu0 %138, %v97
    %v140 = vpop.permute.xlu0 %139
    %143 = vset.pattern.permute.xlu0 0
    %144 = vperm.xlu0 %143, %v98
    %v145 = vpop.permute.xlu0 %144
    %148 = vset.pattern.permute.xlu0 0
    %149 = vperm.xlu0 %148, %v99
    %v150 = vpop.permute.xlu0 %149
    %153 = vset.pattern.permute.xlu0 0
    %154 = vperm.xlu0 %153, %v100
    %v155 = vpop.permute.xlu0 %154
    %158 = vset.pattern.permute.xlu0 0
    %159 = vperm.xlu0 %158, %v101
    %v160 = vpop.permute.xlu0 %159
    %163 = vset.pattern.permute.xlu0 0
    %164 = vperm.xlu0 %163, %v102
    %v165 = vpop.permute.xlu0 %164
    %168 = vset.pattern.permute.xlu0 0
    %169 = vperm.xlu0 %168, %v103
    %v170 = vpop.permute.xlu0 %169
    %173 = vset.pattern.permute.xlu0 0
    %174 = vperm.xlu0 %173, %v104
    %v175 = vpop.permute.xlu0 %174
    %178 = vset.pattern.permute.xlu0 0
    %179 = vperm.xlu0 %178, %v105
    %v180 = vpop.permute.xlu0 %179
    %183 = vset.pattern.permute.xlu0 0
    %184 = vperm.xlu0 %183, %v106
    %v185 = vpop.permute.xlu0 %184
    %v203 = vunpack.c.l.b16 %v75
    %v204 = vunpack.c.l.b16 %v76
    %v205 = vunpack.c.l.b16 %v77
    %v206 = vunpack.c.l.b16 %v78
    %v207 = vunpack.c.l.b16 %v79
    %v208 = vunpack.c.l.b16 %v80
    %v209 = vunpack.c.l.b16 %v81
    %v210 = vunpack.c.l.b16 %v82
    %v211 = vunpack.c.l.b16 %v83
    %v212 = vunpack.c.l.b16 %v84
    %v213 = vunpack.c.l.b16 %v85
    %v214 = vunpack.c.l.b16 %v86
    %v215 = vunpack.c.l.b16 %v87
    %v216 = vunpack.c.l.b16 %v88
    %v217 = vunpack.c.l.b16 %v89
    %v218 = vunpack.c.l.b16 %v90
    %v219 = vpack.c.b16 %v204, %v203
    %v220 = vpack.c.b16 %v206, %v205
    %v221 = vpack.c.b16 %v208, %v207
    %v222 = vpack.c.b16 %v210, %v209
    %v223 = vpack.c.b16 %v212, %v211
    %v224 = vpack.c.b16 %v214, %v213
    %v225 = vpack.c.b16 %v216, %v215
    %v226 = vpack.c.b16 %v218, %v217
    %vm227 = vcmask 261120
    %v229 = vsel %vm227, %v219, 0
    %v232 = vsel %vm227, %v220, 0
    %v235 = vsel %vm227, %v221, 0
    %v238 = vsel %vm227, %v222, 0
    %v241 = vsel %vm227, %v223, 0
    %v244 = vsel %vm227, %v224, 0
    %v247 = vsel %vm227, %v225, 0
    %v250 = vsel %vm227, %v226, 0
    %252 = vmatpush.bf16.msra.mxu0 0
    %253 = vmatpush.bf16.msra.mxu0 0
    %254 = vmatpush.bf16.msra.mxu0 0
    %255 = vmatpush.bf16.msra.mxu0 0
    %256 = vmatpush.bf16.msra.mxu0 0
    %257 = vmatpush.bf16.msra.mxu0 0
    %258 = vmatpush.bf16.msra.mxu0 %v74
    %259 = vmatpush.bf16.msra.mxu0 %v73
    %260 = vmatmul.bf16.gmra.mxu0 %v229
    %v261 = vpop.f32.mrf.mxu0
    %v262 = vadd.f32 %v110, %v261
    %v263 = vpop.f32.mrf.mxu0
    %v264 = vadd.f32 %v115, %v263
    %265 = vmatmul.bf16.gmra.mxu0 %v232
    %v266 = vpop.f32.mrf.mxu0
    %v267 = vadd.f32 %v120, %v266
    %v268 = vpop.f32.mrf.mxu0
    %v269 = vadd.f32 %v125, %v268
    %270 = vmatmul.bf16.gmra.mxu0 %v235
    %v271 = vpop.f32.mrf.mxu0
    %v272 = vadd.f32 %v130, %v271
    %v273 = vpop.f32.mrf.mxu0
    %v274 = vadd.f32 %v135, %v273
    %275 = vmatmul.bf16.gmra.mxu0 %v238
    %v276 = vpop.f32.mrf.mxu0
    %v277 = vadd.f32 %v140, %v276
    %v278 = vpop.f32.mrf.mxu0
    %v279 = vadd.f32 %v145, %v278
    %280 = vmatmul.bf16.gmra.mxu0 %v241
    %v281 = vpop.f32.mrf.mxu0
    %v282 = vadd.f32 %v150, %v281
    %v283 = vpop.f32.mrf.mxu0
    %v284 = vadd.f32 %v155, %v283
    %285 = vmatmul.bf16.gmra.mxu0 %v244
    %v286 = vpop.f32.mrf.mxu0
    %v287 = vadd.f32 %v160, %v286
    %v288 = vpop.f32.mrf.mxu0
    %v289 = vadd.f32 %v165, %v288
    %290 = vmatmul.bf16.gmra.mxu0 %v247
    %v291 = vpop.f32.mrf.mxu0
    %v292 = vadd.f32 %v170, %v291
    %v293 = vpop.f32.mrf.mxu0
    %v294 = vadd.f32 %v175, %v293
    %295 = vmatmul.bf16.gmra.mxu0 %v250
    %v296 = vpop.f32.mrf.mxu0
    %v297 = vadd.f32 %v180, %v296
    %v298 = vpop.f32.mrf.mxu0
    %v299 = vadd.f32 %v185, %v298
    %300 = vdwg.mxu0
    %v301 = vmax.f32 %v262, 0.0
    %v302 = vmax.f32 %v264, 0.0
    %v303 = vmax.f32 %v267, 0.0
    %v304 = vmax.f32 %v269, 0.0
    %v305 = vmax.f32 %v272, 0.0
    %v306 = vmax.f32 %v274, 0.0
    %v307 = vmax.f32 %v277, 0.0
    %v308 = vmax.f32 %v279, 0.0
    %v309 = vmax.f32 %v282, 0.0
    %v310 = vmax.f32 %v284, 0.0
    %v311 = vmax.f32 %v287, 0.0
    %v312 = vmax.f32 %v289, 0.0
    %v313 = vmax.f32 %v292, 0.0
    %v314 = vmax.f32 %v294, 0.0
    %v315 = vmax.f32 %v297, 0.0
    %v316 = vmax.f32 %v299, 0.0
    %v317 = vld [vmem:[%s3] sm:$0xf]
    %v318 = vld [vmem:[%s3 + $0x4] sm:$0xf]
    %v319 = vld [vmem:[%s3 + $0x8] sm:$0xf]
    %v320 = vld [vmem:[%s3 + $0xc] sm:$0xf]
    %v321 = vld [vmem:[%s3 + $0x10] sm:$0xf]
    %v322 = vld [vmem:[%s3 + $0x14] sm:$0xf]
    %v323 = vld [vmem:[%s3 + $0x18] sm:$0xf]
    %v324 = vld [vmem:[%s3 + $0x1c] sm:$0xf]
    %v325 = vpack.c.bf16 %v302, %v301
    %v326 = vpack.c.bf16 %v304, %v303
    %v327 = vpack.c.bf16 %v306, %v305
    %v328 = vpack.c.bf16 %v308, %v307
    %v329 = vpack.c.bf16 %v310, %v309
    %v330 = vpack.c.bf16 %v312, %v311
    %v331 = vpack.c.bf16 %v314, %v313
    %v332 = vpack.c.bf16 %v316, %v315
    %v333 = vld [vmem:[%s4] sm:$0xff]
    %v334 = vld [vmem:[%s4 + $0x8] sm:$0xff]
    %v335 = vld [vmem:[%s4 + $0x10] sm:$0xff]
    %v336 = vld [vmem:[%s4 + $0x18] sm:$0xff]
    %v337 = vld [vmem:[%s4 + $0x20] sm:$0xff]
    %v338 = vld [vmem:[%s4 + $0x28] sm:$0xff]
    %v339 = vld [vmem:[%s4 + $0x30] sm:$0xff]
    %v340 = vld [vmem:[%s4 + $0x38] sm:$0xff]
    %342 = vset.pattern.permute.xlu0 0
    %343 = vperm.xlu0 %342, %v333
    %v344 = vpop.permute.xlu0 %343
    %347 = vset.pattern.permute.xlu0 0
    %348 = vperm.xlu0 %347, %v334
    %v349 = vpop.permute.xlu0 %348
    %352 = vset.pattern.permute.xlu0 0
    %353 = vperm.xlu0 %352, %v335
    %v354 = vpop.permute.xlu0 %353
    %357 = vset.pattern.permute.xlu0 0
    %358 = vperm.xlu0 %357, %v336
    %v359 = vpop.permute.xlu0 %358
    %362 = vset.pattern.permute.xlu0 0
    %363 = vperm.xlu0 %362, %v337
    %v364 = vpop.permute.xlu0 %363
    %367 = vset.pattern.permute.xlu0 0
    %368 = vperm.xlu0 %367, %v338
    %v369 = vpop.permute.xlu0 %368
    %372 = vset.pattern.permute.xlu0 0
    %373 = vperm.xlu0 %372, %v339
    %v374 = vpop.permute.xlu0 %373
    %377 = vset.pattern.permute.xlu0 0
    %378 = vperm.xlu0 %377, %v340
    %v379 = vpop.permute.xlu0 %378
    %v389 = vunpack.c.l.b16 %v317
    %v390 = vunpack.c.l.b16 %v318
    %v391 = vunpack.c.l.b16 %v319
    %v392 = vunpack.c.l.b16 %v320
    %v393 = vunpack.c.l.b16 %v321
    %v394 = vunpack.c.l.b16 %v322
    %v395 = vunpack.c.l.b16 %v323
    %v396 = vunpack.c.l.b16 %v324
    %v397 = vpack.c.b16 %v390, %v389
    %v398 = vpack.c.b16 %v392, %v391
    %v399 = vpack.c.b16 %v394, %v393
    %v400 = vpack.c.b16 %v396, %v395
    %405 = vmatpush.bf16.msra.mxu0 %v332
    %406 = vmatpush.bf16.msra.mxu0 %v331
    %407 = vmatpush.bf16.msra.mxu0 %v330
    %408 = vmatpush.bf16.msra.mxu0 %v329
    %409 = vmatpush.bf16.msra.mxu0 %v328
    %410 = vmatpush.bf16.msra.mxu0 %v327
    %411 = vmatpush.bf16.msra.mxu0 %v326
    %412 = vmatpush.bf16.msra.mxu0 %v325
    %413 = vmatmul.bf16.gmra.mxu0 %v397
    %v414 = vpop.f32.mrf.mxu0
    %v415 = vadd.f32 %v344, %v414
    %v416 = vpop.f32.mrf.mxu0
    %v417 = vadd.f32 %v349, %v416
    %418 = vmatmul.bf16.gmra.mxu0 %v398
    %v419 = vpop.f32.mrf.mxu0
    %v420 = vadd.f32 %v354, %v419
    %v421 = vpop.f32.mrf.mxu0
    %v422 = vadd.f32 %v359, %v421
    %423 = vmatmul.bf16.gmra.mxu0 %v399
    %v424 = vpop.f32.mrf.mxu0
    %v425 = vadd.f32 %v364, %v424
    %v426 = vpop.f32.mrf.mxu0
    %v427 = vadd.f32 %v369, %v426
    %428 = vmatmul.bf16.gmra.mxu0 %v400
    %v429 = vpop.f32.mrf.mxu0
    %v430 = vadd.f32 %v374, %v429
    %v431 = vpop.f32.mrf.mxu0
    %v432 = vadd.f32 %v379, %v431
    %433 = vdwg.mxu0
    %v434 = vmax.f32 %v415, 0.0
    %v435 = vmax.f32 %v417, 0.0
    %v436 = vmax.f32 %v420, 0.0
    %v437 = vmax.f32 %v422, 0.0
    %v438 = vmax.f32 %v425, 0.0
    %v439 = vmax.f32 %v427, 0.0
    %v440 = vmax.f32 %v430, 0.0
    %v441 = vmax.f32 %v432, 0.0
    %v442 = vld [vmem:[%s5] sm:$0xf]
    %v443 = vld [vmem:[%s5 + $0x4] sm:$0xf]
    %v444 = vld [vmem:[%s5 + $0x8] sm:$0xf]
    %v445 = vld [vmem:[%s5 + $0xc] sm:$0xf]
    %v446 = vpack.c.bf16 %v435, %v434
    %v447 = vpack.c.bf16 %v437, %v436
    %v448 = vpack.c.bf16 %v439, %v438
    %v449 = vpack.c.bf16 %v441, %v440
    %v450 = vld [vmem:[%s6] sm:$0xff]
    %v451 = vld [vmem:[%s6 + $0x8] sm:$0xff]
    %v452 = vld [vmem:[%s6 + $0x10] sm:$0xff]
    %v453 = vld [vmem:[%s6 + $0x18] sm:$0xff]
    %455 = vset.pattern.permute.xlu0 0
    %456 = vperm.xlu0 %455, %v450
    %v457 = vpop.permute.xlu0 %456
    %460 = vset.pattern.permute.xlu0 0
    %461 = vperm.xlu0 %460, %v451
    %v462 = vpop.permute.xlu0 %461
    %465 = vset.pattern.permute.xlu0 0
    %466 = vperm.xlu0 %465, %v452
    %v467 = vpop.permute.xlu0 %466
    %470 = vset.pattern.permute.xlu0 0
    %471 = vperm.xlu0 %470, %v453
    %v472 = vpop.permute.xlu0 %471
    %v478 = vunpack.c.l.b16 %v442
    %v479 = vunpack.c.l.b16 %v443
    %v480 = vunpack.c.l.b16 %v444
    %v481 = vunpack.c.l.b16 %v445
    %v482 = vpack.c.b16 %v479, %v478
    %v483 = vpack.c.b16 %v481, %v480
    %vm484 = vcmask 523264
    %v486 = vsel %vm484, %v482, 0
    %v489 = vsel %vm484, %v483, 0
    %491 = vmatpush.bf16.msra.mxu0 0
    %492 = vmatpush.bf16.msra.mxu0 0
    %493 = vmatpush.bf16.msra.mxu0 0
    %494 = vmatpush.bf16.msra.mxu0 0
    %495 = vmatpush.bf16.msra.mxu0 %v449
    %496 = vmatpush.bf16.msra.mxu0 %v448
    %497 = vmatpush.bf16.msra.mxu0 %v447
    %498 = vmatpush.bf16.msra.mxu0 %v446
    %499 = vmatmul.bf16.gmra.mxu0 %v486
    %v500 = vpop.f32.mrf.mxu0
    %v501 = vadd.f32 %v457, %v500
    %v502 = vpop.f32.mrf.mxu0
    %v503 = vadd.f32 %v462, %v502
    %504 = vmatmul.bf16.gmra.mxu0 %v489
    %v505 = vpop.f32.mrf.mxu0
    %v506 = vadd.f32 %v467, %v505
    %v507 = vpop.f32.mrf.mxu0
    %v508 = vadd.f32 %v472, %v507
    %509 = vdwg.mxu0
    %v510 = vmax.f32 %v501, 0.0
    %v511 = vmax.f32 %v503, 0.0
    %v512 = vmax.f32 %v506, 0.0
    %v513 = vmax.f32 %v508, 0.0
    %v514 = vld [vmem:[%s7] sm:$0xf]
    %v515 = vld [vmem:[%s7 + $0x4] sm:$0xf]
    %v516 = vpack.c.bf16 %v511, %v510
    %v517 = vpack.c.bf16 %v513, %v512
    %v518 = vld [vmem:[%s8] sm:$0xff]
    %v519 = vld [vmem:[%s8 + $0x8] sm:$0xff]
    %521 = vset.pattern.permute.xlu0 0
    %522 = vperm.xlu0 %521, %v518
    %v523 = vpop.permute.xlu0 %522
    %526 = vset.pattern.permute.xlu0 0
    %527 = vperm.xlu0 %526, %v519
    %v528 = vpop.permute.xlu0 %527
    %v532 = vunpack.c.l.b16 %v514
    %v533 = vunpack.c.l.b16 %v515
    %v534 = vpack.c.b16 %v533, %v532
    %v536 = vsel %vm227, %v534, 0
    %538 = vmatpush.bf16.msra.mxu0 0
    %539 = vmatpush.bf16.msra.mxu0 0
    %540 = vmatpush.bf16.msra.mxu0 0
    %541 = vmatpush.bf16.msra.mxu0 0
    %542 = vmatpush.bf16.msra.mxu0 0
    %543 = vmatpush.bf16.msra.mxu0 0
    %544 = vmatpush.bf16.msra.mxu0 %v517
    %545 = vmatpush.bf16.msra.mxu0 %v516
    %546 = vmatmul.bf16.gmra.mxu0 %v536
    %v547 = vpop.f32.mrf.mxu0
    %v548 = vadd.f32 %v523, %v547
    %v549 = vpop.f32.mrf.mxu0
    %v550 = vadd.f32 %v528, %v549
    %551 = vdwg.mxu0
    %v552 = vmax.f32 %v548, 0.0
    %v553 = vmax.f32 %v550, 0.0
    %v554 = vld [vmem:[%s9] sm:$0x3]
    %v555 = vpack.c.bf16 %v553, %v552
    %v556 = vld [vmem:[%s10] sm:$0xf]
    %558 = vset.pattern.permute.xlu0 0
    %559 = vperm.xlu0 %558, %v556
    %v560 = vpop.permute.xlu0 %559
    %vm562 = vcmask 130048
    %v564 = vsel %vm562, %v554, 0
    %566 = vmatpush.bf16.msra.mxu0 0
    %567 = vmatpush.bf16.msra.mxu0 0
    %568 = vmatpush.bf16.msra.mxu0 0
    %569 = vmatpush.bf16.msra.mxu0 0
    %570 = vmatpush.bf16.msra.mxu0 0
    %571 = vmatpush.bf16.msra.mxu0 0
    %572 = vmatpush.bf16.msra.mxu0 0
    %573 = vmatpush.bf16.msra.mxu0 %v555
    %574 = vmatmul.bf16.gmra.mxu0 %v564
    %v575 = vpop.f32.mrf.mxu0
    %v576 = vadd.f32 %v560, %v575
    %v577 = vpop.f32.mrf.mxu0
    %578 = vdwg.mxu0
    %vm579 = vcmask 60416
    %580 = vst.msk [vmem:[#allocation2] sm:$0xf] %vm579, %v576
    // Predicated region
    $region46: #{tpu_custom_call.1} parent=1 // pred_check
      _
    $region47: #{tpu_custom_call.1} parent=1 // pred_check_branch
      %582 = sbr.rel (0) target = $region49
    $region48: #{tpu_custom_call.1} parent=1 // pred_region
      %584 = vsyncadd [#allocation3], 0
      %s586 = sshll.u32 [#allocation2], 4
      %s587 = int_to_ptr.vmem [resolvable:$true] %s586
      %s588 = sshll.u32 %s11, 4
      %s589 = int_to_ptr.hbm [resolvable:$true] %s588
      %591 = dma.vmem_to_hbm [thread:$0]  %s587, 64, %s589, [#allocation3]
    $region49: #{tpu_custom_call.1} parent=1 // pred_fallthru
      _
    // Predicated region
    $region50: #{tpu_custom_call.1} parent=1 // pred_check
      _
    $region51: #{tpu_custom_call.1} parent=1 // pred_check_branch
      %593 = sbr.rel (0) target = $region53
    $region52: #{tpu_custom_call.1} parent=1 // pred_region
      %595 = dma.done [#allocation3], 64
    $region53: #{tpu_custom_call.1} parent=1 // pred_fallthru
      _
    %596 = vsyncpa [#allocation3], 1

</llo_original>
